<compile_context>
chip_gen: v6e
topology: v6e:2x2x1
jax: 0.10.0
libtpu: 0.0.40
codegen_flags: <defaults>
</compile_context>

<pallas_src>
import functools
import math

import jax
import jax.numpy as jnp
from jax import lax
from jax.experimental import pallas as pl
from jax.experimental.pallas import tpu as pltpu

_MASK_VALUE = -1e30  # large finite negative; avoids exp(-inf - -inf) NaNs


def fuse_head_weights(w_key, w_query, w_value):
    """Fuse PyTorch nn.Linear weights (H, C) into one (C, 3H) matrix [q|k|v],
    with the 1/sqrt(C) attention scale folded into the query columns.

    Do this ONCE at parameter-setup time, not per forward call.
    """
    C = w_key.shape[1]
    scale = 1.0 / math.sqrt(C)
    return jnp.concatenate([w_query.T * scale, w_key.T, w_value.T], axis=1)


def _block_causal_mask(bt, T, dtype=jnp.float32):
    """Additive mask for a (bt*T, bt*T) score tile: 0 where the key position is
    in the same sequence and <= the query position, -1e30 elsewhere."""
    M = bt * T
    idx = jnp.arange(M)
    seq = idx // T
    keep = (seq[:, None] == seq[None, :]) & (idx[None, :] <= idx[:, None])
    return jnp.where(keep, 0.0, _MASK_VALUE).astype(dtype)


def _pick_batch_tile(B, T, C, H):
    """Largest divisor of B that (a) gives >= 2 grid steps when B > 1 so a
    parallel grid axis can shard across v7x's 2 TensorCores, and (b) keeps the
    per-step VMEM estimate under a conservative budget (sized against v7x's
    32 MiB scoped default / 64 MiB physical VMEM)."""
    budget = 24 << 20

    def est_bytes(bt):
        M = bt * T
        return 4 * (2 * M * C          # x double buffer
                    + 2 * M * H        # out double buffer
                    + 2 * C * 3 * H    # fused weight double buffer
                    + 2 * M * M        # mask double buffer
                    + M * 3 * H        # qkv intermediate
                    + 2 * M * M)       # scores + softmax weights (f32)

    divisors = [d for d in range(B, 0, -1) if B % d == 0]
    if B > 1:
        # Prefer tiles that leave >= 2 grid steps; fall back to B if needed.
        divisors = [d for d in divisors if d < B] + [B]
    for bt in divisors:
        if est_bytes(bt) <= budget:
            return bt
    return 1


def _head_kernel(x_ref, wqkv_ref, mask_ref, o_ref, *, head_size, matmul_dtype):
    # x_ref:    (M, C)   flattened batch tile of inputs, M = bt*T
    # wqkv_ref: (C, 3H)  fused [q|k|v] weights, q columns pre-scaled by 1/sqrt(C)
    # mask_ref: (M, M)   additive block-diagonal causal mask (0 / -1e30)
    # o_ref:    (M, H)
    H = head_size

    x = x_ref[...]
    w = wqkv_ref[...]
    if matmul_dtype is not None:
        x = x.astype(matmul_dtype)
        w = w.astype(matmul_dtype)

    # One fused projection matmul: (M, C) @ (C, 3H) -> (M, 3H), f32 accumulation.
    qkv = jnp.dot(x, w, preferred_element_type=jnp.float32)

    q = qkv[:, :H]            # already scaled by 1/sqrt(C) via the fused weight
    k = qkv[:, H:2 * H]
    v = qkv[:, 2 * H:]
    if matmul_dtype is not None:
        q = q.astype(matmul_dtype)
        k = k.astype(matmul_dtype)
        v = v.astype(matmul_dtype)

    # Whole-tile scores in one MXU pass: contract the H dims -> (M, M); the
    # transpose of k is absorbed into the dot_general (no XLU transpose).
    scores = lax.dot_general(q, k, (((1,), (1,)), ((), ())),
                             preferred_element_type=jnp.float32)
    # Hoisted additive mask: one VPU add enforces block-diagonal + causal.
    scores = scores + mask_ref[...]

    # Softmax in f32; divide moved to the EUP via approximate reciprocal.
    m = jnp.max(scores, axis=-1, keepdims=True)
    p = jnp.exp(scores - m)
    denom = jnp.sum(p, axis=-1, keepdims=True)
    weights = p * pl.reciprocal(denom, approx=True)

    # Dropout: eval mode -> identity.

    pv_dtype = jnp.float32 if matmul_dtype is None else matmul_dtype
    out = jnp.dot(weights.astype(pv_dtype), v,
                  preferred_element_type=jnp.float32)   # (M, H)
    o_ref[...] = out.astype(o_ref.dtype)


def head_forward(x, w_qkv, *, head_size, batch_tile=None,
                 matmul_dtype=jnp.bfloat16):
    """x: (B, T, C); w_qkv: (C, 3H) fused weight from fuse_head_weights().

    matmul_dtype: bf16 by default (MXU-native on all TPU gens, f32
    accumulation, f32 softmax).  Pass None for a full-f32 path.
    """
    B, T, C = x.shape
    H = head_size
    assert w_qkv.shape == (C, 3 * H), "w_qkv must be the fused (C, 3H) weight"

    bt = _pick_batch_tile(B, T, C, H) if batch_tile is None else batch_tile
    assert B % bt == 0, "batch_tile must divide the batch size"
    M = bt * T

    # Flatten (B, T) -> rows so the projection matmul sees M = bt*T per step.
    x2 = x.reshape(B * T, C)
    mask = _block_causal_mask(bt, T)

    kernel = functools.partial(_head_kernel, head_size=H,
                               matmul_dtype=matmul_dtype)

    out2 = pl.pallas_call(
        kernel,
        out_shape=jax.ShapeDtypeStruct((B * T, H), x.dtype),
        grid=(B // bt,),
        in_specs=[
            pl.BlockSpec((M, C), lambda i: (i, 0)),
            pl.BlockSpec((C, 3 * H), lambda i: (0, 0)),
            pl.BlockSpec((M, M), lambda i: (0, 0)),
        ],
        out_specs=pl.BlockSpec((M, H), lambda i: (i, 0)),
        compiler_params=pltpu.CompilerParams(
            dimension_semantics=("parallel",),
            vmem_limit_bytes=32 * 1024 * 1024),
    )(x2, w_qkv, mask)

    return out2.reshape(B, T, H)


def head_reference(x, w_key, w_query, w_value):
    """Pure-JAX reference mirroring the PyTorch forward (eval mode)."""
    B, T, C = x.shape
    k = x @ w_key.T
    q = x @ w_query.T
    v = x @ w_value.T
    scores = (q @ jnp.swapaxes(k, -1, -2)) * (C ** -0.5)
    tril = jnp.tril(jnp.ones((T, T), dtype=bool))
    scores = jnp.where(tril, scores, -jnp.inf)
    weights = jax.nn.softmax(scores, axis=-1)
    return weights @ v


if __name__ == "__main__":
    # Small shapes consistent with the module.
    B, T = 2, 8                 # batch, sequence length (= block_size)
    num_embeddings = 32         # C
    head_size = 16              # H

    key = jax.random.PRNGKey(0)
    kx, kk, kq, kv = jax.random.split(key, 4)

    x = jax.random.normal(kx, (B, T, num_embeddings), dtype=jnp.float32)
    # nn.Linear(num_embeddings, head_size, bias=False) -> weight (H, C)
    init = 1.0 / math.sqrt(num_embeddings)
    w_key = jax.random.uniform(kk, (head_size, num_embeddings),
                               minval=-init, maxval=init, dtype=jnp.float32)
    w_query = jax.random.uniform(kq, (head_size, num_embeddings),
                                 minval=-init, maxval=init, dtype=jnp.float32)
    w_value = jax.random.uniform(kv, (head_size, num_embeddings),
                                 minval=-init, maxval=init, dtype=jnp.float32)

    # Fuse weights (and fold the 1/sqrt(C) scale) once, outside the call path.
    w_qkv = fuse_head_weights(w_key, w_query, w_value)

    ref = head_reference(x, w_key, w_query, w_value)

    # Default path: bf16 MXU operands, f32 accumulation + softmax.
    out = head_forward(x, w_qkv, head_size=head_size)
    out = jax.block_until_ready(out)
    assert out.shape == (B, T, head_size)
    # Tolerance covers bf16 operand rounding + the EUP approximate reciprocal.
    assert jnp.allclose(out, ref, atol=3e-2, rtol=3e-2), "bf16 path mismatch"

    # Full-f32 path (only approximation left is the approximate reciprocal).
    out_f32 = head_forward(x, w_qkv, head_size=head_size, matmul_dtype=None)
    out_f32 = jax.block_until_ready(out_f32)
    assert jnp.allclose(out_f32, ref, atol=2e-3, rtol=2e-3), "f32 path mismatch"

    print("KERNEL_OK")
</pallas_src>

<mosaic_0001>
module attributes {stable_mosaic.version = 11 : i64} {
  func.func @_head_kernel(%arg0: i32, %arg1: memref<8x32xf32, #tpu.memory_space<vmem>>, %arg2: memref<32x48xf32, #tpu.memory_space<vmem>>, %arg3: memref<8x8xf32, #tpu.memory_space<vmem>>, %arg4: memref<8x16xf32, #tpu.memory_space<vmem>>) attributes {dimension_semantics = [#tpu.dimension_semantics<parallel>], iteration_bounds = array<i64: 2>, scalar_prefetch = 0 : i64, scratch_operands = 0 : i64, tpu.core_type = #tpu.core_type<tc>, window_params = [{transform_indices = @transform_0, window_bounds = array<i64: 8, 32>}, {pipeline_mode = #tpu.pipeline_mode<synchronous>, transform_indices = @transform_1, window_bounds = array<i64: 32, 48>}, {pipeline_mode = #tpu.pipeline_mode<synchronous>, transform_indices = @transform_2, window_bounds = array<i64: 8, 8>}, {transform_indices = @transform_3, window_bounds = array<i64: 8, 16>}]} {
    %c0 = arith.constant 0 : index
    %c0_0 = arith.constant 0 : index
    %0 = vector.load %arg1[%c0, %c0_0] : memref<8x32xf32, #tpu.memory_space<vmem>>, vector<8x32xf32>
    %c0_1 = arith.constant 0 : index
    %c0_2 = arith.constant 0 : index
    %1 = vector.load %arg2[%c0_1, %c0_2] : memref<32x48xf32, #tpu.memory_space<vmem>>, vector<32x48xf32>
    %2 = arith.truncf %0 : vector<8x32xf32> to vector<8x32xbf16>
    %3 = arith.truncf %1 : vector<32x48xf32> to vector<32x48xbf16>
    %cst = arith.constant dense<0.000000e+00> : vector<8x48xf32>
    %4 = tpu.matmul %2, %3, %cst {dimension_numbers = #tpu.dot_dimension_numbers<[1], [0], [0], [1], [0, 0, 1, 1], [], []>} : vector<8x32xbf16>, vector<32x48xbf16>, vector<8x48xf32> -> vector<8x48xf32>
    %5 = vector.extract_strided_slice %4 {offsets = [0, 0], sizes = [8, 16], strides = [1, 1]} : vector<8x48xf32> to vector<8x16xf32>
    %6 = vector.extract_strided_slice %4 {offsets = [0, 16], sizes = [8, 16], strides = [1, 1]} : vector<8x48xf32> to vector<8x16xf32>
    %7 = vector.extract_strided_slice %4 {offsets = [0, 32], sizes = [8, 16], strides = [1, 1]} : vector<8x48xf32> to vector<8x16xf32>
    %8 = arith.truncf %5 : vector<8x16xf32> to vector<8x16xbf16>
    %9 = arith.truncf %6 : vector<8x16xf32> to vector<8x16xbf16>
    %10 = arith.truncf %7 : vector<8x16xf32> to vector<8x16xbf16>
    %cst_3 = arith.constant dense<0.000000e+00> : vector<8x8xf32>
    %11 = tpu.matmul %8, %9, %cst_3 {dimension_numbers = #tpu.dot_dimension_numbers<[1], [1], [0], [0], [0, 0, 1, 0], [], []>} : vector<8x16xbf16>, vector<8x16xbf16>, vector<8x8xf32> -> vector<8x8xf32>
    %c0_4 = arith.constant 0 : index
    %c0_5 = arith.constant 0 : index
    %12 = vector.load %arg3[%c0_4, %c0_5] : memref<8x8xf32, #tpu.memory_space<vmem>>, vector<8x8xf32>
    %13 = arith.addf %11, %12 : vector<8x8xf32>
    %cst_6 = arith.constant dense<0xFF800000> : vector<8xf32>
    %14 = vector.multi_reduction <maximumf>, %13, %cst_6 [1] : vector<8x8xf32> to vector<8xf32>
    %15 = vector.shape_cast %14 : vector<8xf32> to vector<8x1xf32>
    %16 = vector.broadcast %15 : vector<8x1xf32> to vector<8x8xf32>
    %17 = arith.subf %13, %16 : vector<8x8xf32>
    %18 = math.exp %17 : vector<8x8xf32>
    %cst_7 = arith.constant dense<0.000000e+00> : vector<8xf32>
    %19 = vector.multi_reduction <add>, %18, %cst_7 [1] : vector<8x8xf32> to vector<8xf32>
    %20 = vector.shape_cast %19 : vector<8xf32> to vector<8x1xf32>
    %21 = tpu.reciprocal %20 {approx = true} : vector<8x1xf32> -> vector<8x1xf32>
    %22 = vector.broadcast %21 : vector<8x1xf32> to vector<8x8xf32>
    %23 = arith.mulf %18, %22 : vector<8x8xf32>
    %24 = arith.truncf %23 : vector<8x8xf32> to vector<8x8xbf16>
    %cst_8 = arith.constant dense<0.000000e+00> : vector<8x16xf32>
    %25 = tpu.matmul %24, %10, %cst_8 {dimension_numbers = #tpu.dot_dimension_numbers<[1], [0], [0], [1], [0, 0, 1, 1], [], []>} : vector<8x8xbf16>, vector<8x16xbf16>, vector<8x16xf32> -> vector<8x16xf32>
    %c0_9 = arith.constant 0 : index
    %c0_10 = arith.constant 0 : index
    %26 = vector.load %arg4[%c0_9, %c0_10] : memref<8x16xf32, #tpu.memory_space<vmem>>, vector<8x16xf32>
    tpu.vector_store %arg4[%c0_9, %c0_10], %25 {strides = array<i32>} : memref<8x16xf32, #tpu.memory_space<vmem>>, vector<8x16xf32>,
    return
  }
  func.func @transform_0(%arg0: i32) -> (i32, i32) {
    %c0_i32 = arith.constant 0 : i32
    %c0_i32_0 = arith.constant 0 : i32
    return %arg0, %c0_i32 : i32, i32
  }
  func.func @transform_1(%arg0: i32) -> (i32, i32) {
    %c0_i32 = arith.constant 0 : i32
    %c0_i32_0 = arith.constant 0 : i32
    %c0_i32_1 = arith.constant 0 : i32
    return %c0_i32, %c0_i32_0 : i32, i32
  }
  func.func @transform_2(%arg0: i32) -> (i32, i32) {
    %c0_i32 = arith.constant 0 : i32
    %c0_i32_0 = arith.constant 0 : i32
    %c0_i32_1 = arith.constant 0 : i32
    return %c0_i32, %c0_i32_0 : i32, i32
  }
  func.func @transform_3(%arg0: i32) -> (i32, i32) {
    %c0_i32 = arith.constant 0 : i32
    %c0_i32_0 = arith.constant 0 : i32
    return %arg0, %c0_i32 : i32, i32
  }
}

</mosaic_0001>

<llo_original>
// kernel: tpu_custom_call.1
$region0: #{tpu_custom_call.1}
  #allocation0 [shape = 'u32[]', space=smem, size = 0x4, offset = 0x4, fixed_abs, tag = 'smem constant byte address 0x4 - core index']
  #allocation1 [shape = 'u32[144,128]{1,0:T(1,128)}', space=vmem, size = 0x12000, scoped, tag = 'internal scratch']
  %s0 = inlined_call_operand.hbm [shape: f32[16,32], index: 0, kind: input, shape index: {}]
  %s1 = inlined_call_operand.hbm [shape: f32[32,48], index: 1, kind: input, shape index: {}]
  %s2 = inlined_call_operand.hbm [shape: f32[8,8], index: 2, kind: input, shape index: {}]
  %s3 = inlined_call_operand.hbm [shape: f32[16,16], index: 3, kind: output, shape index: {}]
  %s4 = sld [smem:[#allocation0]]
  $region57: #{tpu_custom_call.1} parent=0
    _
  %s6 = ssub.s32 1, %s4
  %s7 = scalar_select 0, %s6, %s4
  $region1: #{tpu_custom_call.1} parent=0
    #allocation2 [shape = 'u8[8192]{0}', space=vmem, size = 0x2000, scoped, tag = 'input window, operand 0']
    #allocation3 [shape = 's32[2]{0}', space=sflag, size = 0x8, scoped, tag = 'scoped memory for tpu_custom_call.1']
    #allocation4 [shape = 's32[2]{0}', space=sflag, size = 0x8, scoped, tag = 'scoped memory for tpu_custom_call.1']
    #allocation5 [shape = 'u8[16384]{0}', space=vmem, size = 0x4000, scoped, tag = 'input window, operand 1, single buffered']
    #allocation6 [shape = 's32[1]{0}', space=sflag, size = 0x4, scoped, tag = 'scoped memory for tpu_custom_call.1']
    #allocation7 [shape = 'u8[4096]{0}', space=vmem, size = 0x1000, scoped, tag = 'input window, operand 2, single buffered']
    #allocation8 [shape = 'u8[8192]{0}', space=vmem, size = 0x2000, scoped, tag = 'output window, operand 0']
    %8 = vsyncpa [#allocation3], 0
    %s9 = scalar_lea.sflag [#allocation3], 1
    %10 = vsyncpa %s9, 0
    %11 = vsyncpa [#allocation6], 0
    %12 = vsyncpa [#allocation4], 0
    %s13 = scalar_lea.sflag [#allocation4], 1
    %14 = vsyncpa %s13, 0
    loop: start=0, step=1, limit=4
    $region2: #{tpu_custom_call.1} parent=1 // loop_pre_header
      _
    $region3: #{tpu_custom_call.1} parent=1 // loop_header
      %s16 = sphi 0, %s20
      %p17 = scmp.ge.s32.totalorder %s16, 4
      %s26 = sphi 0, %s28
      %s29 = sphi 0, %s26
      %s30 = sphi 0, %s29
      %s46 = sphi 0, %s30
      %s50 = sphi 0, %s50
      %s52 = sphi 0, %s50
      %s53 = sphi 0, %s52
      %s67 = sphi 0, %s53
      %s71 = sphi 0, %s71
      %s73 = sphi 0, %s71
      %s74 = sphi 0, %s73
      %s88 = sphi 0, %s74
      %s94 = sphi 0, %s96
      %s97 = sphi 0, %s94
      %s98 = sphi 0, %s97
      %s114 = sphi 0, %s98
    $region4: #{tpu_custom_call.1} parent=1 // loop_header_branch
      %19 = sbr.rel (%p17) target = $region8
    $region5: #{tpu_custom_call.1} parent=1 // loop_body
      %s21 = ssub.s32 %s16, 1
      %s22 = ssub.s32 %s16, 2
      %s23 = sadd.s32 %s16, 1
      %s24 = ssub.s32 %s16, %s23
      %p25 = scmp.eq.s32.totalorder %s24, 0
      %s27 = sadd.s32 %s26, 1
      %s28 = scalar_select %p25, %s26, %s27
      %p31 = pneg %p25
      %p32 = scmp.eq.s32.totalorder %s16, 1
      %p33 = por %p31, %p32
      %p34 = scmp.ne.s32.totalorder %s26, %s29
      %p35 = scmp.eq.s32.totalorder %s16, 0
      %p36 = por %p34, %p35
      %p37 = scmp.ne.s32.totalorder %s26, %s29
      %p38 = scmp.eq.s32.totalorder %s21, 1
      %p39 = por %p37, %p38
      %p40 = scmp.ne.s32.totalorder %s29, %s30
      %p41 = scmp.eq.s32.totalorder %s21, 0
      %p42 = por %p40, %p41
      %p43 = scmp.ne.s32.totalorder %s29, %s30
      %p44 = scmp.eq.s32.totalorder %s22, 1
      %p45 = por %p43, %p44
      %p47 = scmp.ne.s32.totalorder %s30, %s46
      %p48 = scmp.eq.s32.totalorder %s22, 0
      %p49 = por %p47, %p48
      %s51 = sadd.s32 %s50, 1
      %p54 = scmp.eq.s32.totalorder %s16, 1
      %p55 = scmp.ne.s32.totalorder %s50, %s52
      %p56 = scmp.eq.s32.totalorder %s16, 0
      %p57 = por %p55, %p56
      %p58 = scmp.ne.s32.totalorder %s50, %s52
      %p59 = scmp.eq.s32.totalorder %s21, 1
      %p60 = por %p58, %p59
      %p61 = scmp.ne.s32.totalorder %s52, %s53
      %p62 = scmp.eq.s32.totalorder %s21, 0
      %p63 = por %p61, %p62
      %p64 = scmp.ne.s32.totalorder %s52, %s53
      %p65 = scmp.eq.s32.totalorder %s22, 1
      %p66 = por %p64, %p65
      %p68 = scmp.ne.s32.totalorder %s53, %s67
      %p69 = scmp.eq.s32.totalorder %s22, 0
      %p70 = por %p68, %p69
      %s72 = sadd.s32 %s71, 1
      %p75 = scmp.eq.s32.totalorder %s16, 1
      %p76 = scmp.ne.s32.totalorder %s71, %s73
      %p77 = scmp.eq.s32.totalorder %s16, 0
      %p78 = por %p76, %p77
      %p79 = scmp.ne.s32.totalorder %s71, %s73
      %p80 = scmp.eq.s32.totalorder %s21, 1
      %p81 = por %p79, %p80
      %p82 = scmp.ne.s32.totalorder %s73, %s74
      %p83 = scmp.eq.s32.totalorder %s21, 0
      %p84 = por %p82, %p83
      %p85 = scmp.ne.s32.totalorder %s73, %s74
      %p86 = scmp.eq.s32.totalorder %s22, 1
      %p87 = por %p85, %p86
      %p89 = scmp.ne.s32.totalorder %s74, %s88
      %p90 = scmp.eq.s32.totalorder %s22, 0
      %p91 = por %p89, %p90
      %s92 = ssub.s32 %s16, %s23
      %p93 = scmp.eq.s32.totalorder %s92, 0
      %s95 = sadd.s32 %s94, 1
      %s96 = scalar_select %p93, %s94, %s95
      %p99 = pneg %p93
      %p100 = scmp.eq.s32.totalorder %s16, 1
      %p101 = por %p99, %p100
      %p102 = scmp.ne.s32.totalorder %s94, %s97
      %p103 = scmp.eq.s32.totalorder %s16, 0
      %p104 = por %p102, %p103
      %p105 = scmp.ne.s32.totalorder %s94, %s97
      %p106 = scmp.eq.s32.totalorder %s21, 1
      %p107 = por %p105, %p106
      %p108 = scmp.ne.s32.totalorder %s97, %s98
      %p109 = scmp.eq.s32.totalorder %s21, 0
      %p110 = por %p108, %p109
      %p111 = scmp.ne.s32.totalorder %s97, %s98
      %p112 = scmp.eq.s32.totalorder %s22, 1
      %p113 = por %p111, %p112
      %p115 = scmp.ne.s32.totalorder %s98, %s114
      %p116 = scmp.eq.s32.totalorder %s22, 0
      %p117 = por %p115, %p116
      %p118 = scmp.le.s32.totalorder 1, %s16
      %p119 = scmp.lt.s32.totalorder %s16, 3
      %p120 = pnand %p118, %p119
      %p121 = pneg %p120
      // Predicated region
      $region9: #{tpu_custom_call.1} parent=5 // pred_check
        _
      $region10: #{tpu_custom_call.1} parent=5 // pred_check_branch
        %123 = sbr.rel (%p120) target = $region12
      $region11: #{tpu_custom_call.1} parent=5 // pred_region
        %s124 = ssub.s32 %s16, 1
        // Predicated region
        $region13: #{tpu_custom_call.1} parent=11 // pred_check
          %p125 = pneg %p63
        $region14: #{tpu_custom_call.1} parent=11 // pred_check_branch
          %127 = sbr.rel (%p125) target = $region16
        $region15: #{tpu_custom_call.1} parent=11 // pred_region
          %s129 = ssub.s32 512, 512
          %130 = vsyncadd [#allocation6], %s129
          %s131 = sshll.u32 [#allocation5], 4
          %s132 = int_to_ptr.vmem [resolvable:$true] %s131
          %137 = dma.hbm_to_vmem [thread:$0]  %s1, 512, %s132, [#allocation6], 128, 128, 8
        $region16: #{tpu_custom_call.1} parent=11 // pred_fallthru
          _
        // Predicated region
        $region17: #{tpu_custom_call.1} parent=11 // pred_check
          %p138 = pneg %p84
        $region18: #{tpu_custom_call.1} parent=11 // pred_check_branch
          %140 = sbr.rel (%p138) target = $region20
        $region19: #{tpu_custom_call.1} parent=11 // pred_region
          %s142 = ssub.s32 128, 128
          %143 = vsyncadd [#allocation6], %s142
          %s145 = sshll.u32 [#allocation7], 4
          %s146 = int_to_ptr.vmem [resolvable:$true] %s145
          %148 = dma.hbm_to_vmem [thread:$0]  %s2, 128, %s146, [#allocation6]
        $region20: #{tpu_custom_call.1} parent=11 // pred_fallthru
          _
      $region12: #{tpu_custom_call.1} parent=5 // pred_fallthru
        _
      %p149 = scmp.lt.s32.totalorder %s16, 2
      // Predicated region
      $region21: #{tpu_custom_call.1} parent=5 // pred_check
        %p150 = pneg %p149
      $region22: #{tpu_custom_call.1} parent=5 // pred_check_branch
        %152 = sbr.rel (%p150) target = $region24
      $region23: #{tpu_custom_call.1} parent=5 // pred_region
        // Predicated region
        $region25: #{tpu_custom_call.1} parent=23 // pred_check
          %p153 = pneg %p36
        $region26: #{tpu_custom_call.1} parent=23 // pred_check_branch
          %155 = sbr.rel (%p153) target = $region28
        $region27: #{tpu_custom_call.1} parent=23 // pred_region
          %s156 = sand.u32 %s26, 1
          %s157 = scalar_lea.sflag [#allocation3], %s156
          %s158 = sand.u32 %s26, 1
          %s159 = smul.addr %s158, 8
          %s160 = scalar_lea.vmem [#allocation2], %s159
          %s162 = ssub.s32 128, 128
          %163 = vsyncadd %s157, %s162
          %s164 = smul.addr %s16, 128
          %s165 = scalar_lea.hbm %s0, %s164
          %s167 = sshll.u32 %s160, 4
          %s168 = int_to_ptr.vmem [resolvable:$true] %s167
          %170 = dma.hbm_to_vmem [thread:$0]  %s165, 128, %s168, %s157
        $region28: #{tpu_custom_call.1} parent=23 // pred_fallthru
          _
      $region24: #{tpu_custom_call.1} parent=5 // pred_fallthru
        _
      %p171 = scmp.le.s32.totalorder 1, %s16
      %p172 = scmp.lt.s32.totalorder %s16, 3
      %p173 = pnand %p171, %p172
      %p174 = pneg %p173
      // Predicated region
      $region29: #{tpu_custom_call.1} parent=5 // pred_check
        _
      $region30: #{tpu_custom_call.1} parent=5 // pred_check_branch
        %176 = sbr.rel (%p173) target = $region32
      $region31: #{tpu_custom_call.1} parent=5 // pred_region
        %s177 = ssub.s32 %s16, 1
        %s178 = sand.u32 %s29, 1
        %s179 = scalar_lea.sflag [#allocation3], %s178
        %s180 = sand.u32 %s29, 1
        %s181 = smul.addr %s180, 8
        %s182 = scalar_lea.vmem [#allocation2], %s181
        // Predicated region
        $region33: #{tpu_custom_call.1} parent=31 // pred_check
          %p183 = pneg %p42
        $region34: #{tpu_custom_call.1} parent=31 // pred_check_branch
          %185 = sbr.rel (%p183) target = $region36
        $region35: #{tpu_custom_call.1} parent=31 // pred_region
          %186 = dma.done %s179, 128
        $region36: #{tpu_custom_call.1} parent=31 // pred_fallthru
          _
        // Predicated region
        $region37: #{tpu_custom_call.1} parent=31 // pred_check
          %p187 = pneg %p63
        $region38: #{tpu_custom_call.1} parent=31 // pred_check_branch
          %189 = sbr.rel (%p187) target = $region40
        $region39: #{tpu_custom_call.1} parent=31 // pred_region
          %190 = dma.done [#allocation6], 512
        $region40: #{tpu_custom_call.1} parent=31 // pred_fallthru
          _
        // Predicated region
        $region41: #{tpu_custom_call.1} parent=31 // pred_check
          %p191 = pneg %p84
        $region42: #{tpu_custom_call.1} parent=31 // pred_check_branch
          %193 = sbr.rel (%p191) target = $region44
        $region43: #{tpu_custom_call.1} parent=31 // pred_region
          %194 = dma.done [#allocation6], 128
        $region44: #{tpu_custom_call.1} parent=31 // pred_fallthru
          _
        %s195 = sand.u32 %s29, 1
        %s196 = scalar_lea.sflag [#allocation3], %s195
        %s197 = sand.u32 %s29, 1
        %s198 = smul.addr %s197, 8
        %s199 = scalar_lea.vmem [#allocation2], %s198
        %p200 = pneg %p42
        %p201 = pneg %p39
        %p202 = pneg %p63
        %p203 = pneg %p60
        %p204 = pneg %p84
        %p205 = pneg %p81
        %p206 = pneg %p110
        %p207 = pneg %p107
        %s208 = sand.u32 %s97, 1
        %s209 = scalar_lea.sflag [#allocation4], %s208
        %s210 = sand.u32 %s97, 1
        %s211 = smul.addr %s210, 8
        %s212 = scalar_lea.vmem [#allocation8], %s211
        %v214 = vld [vmem:[%s182] sm:$0xff]
        %v215 = vld [vmem:[#allocation5] sm:$0xff]
        %v216 = vld [vmem:[#allocation5 + $0x8] sm:$0xff]
        %v217 = vld [vmem:[#allocation5 + $0x10] sm:$0xff]
        %v218 = vld [vmem:[#allocation5 + $0x18] sm:$0xff]
        %v219 = vpack.c.bf16 %v214, %v214
        %v220 = vpack.c.bf16 %v216, %v215
        %v221 = vpack.c.bf16 %v218, %v217
        %vm222 = vcmask 261120
        %v224 = vsel %vm222, %v219, 0
        %226 = vmatprep.subr.bf16.mxu0 0
        %227 = vmatpush1.bf16.msra.mxu0 0
        %228 = vmatprep.subr.bf16.mxu0 0
        %229 = vmatpush1.bf16.msra.mxu0 0
        %230 = vmatprep.subr.bf16.mxu0 0
        %231 = vmatpush1.bf16.msra.mxu0 0
        %232 = vmatprep.subr.bf16.mxu0 0
        %233 = vmatpush1.bf16.msra.mxu0 0
        %234 = vmatprep.subr.bf16.mxu0 0
        %235 = vmatpush1.bf16.msra.mxu0 0
        %236 = vmatprep.subr.bf16.mxu0 0
        %237 = vmatpush1.bf16.msra.mxu0 0
        %238 = vmatprep.subr.bf16.mxu0 0
        %239 = vmatpush1.bf16.msra.mxu0 %v221
        %240 = vmatprep.subr.bf16.mxu0 0
        %241 = vmatpush1.bf16.msra.mxu0 %v220
        %242 = vmatprep.subr.bf16.mxu0 0
        %243 = vmatpush2.bf16.msra.mxu0 0
        %244 = vmatprep.subr.bf16.mxu0 0
        %245 = vmatpush2.bf16.msra.mxu0 0
        %246 = vmatprep.subr.bf16.mxu0 0
        %247 = vmatpush2.bf16.msra.mxu0 0
        %248 = vmatprep.subr.bf16.mxu0 0
        %249 = vmatpush2.bf16.msra.mxu0 0
        %250 = vmatprep.subr.bf16.mxu0 0
        %251 = vmatpush2.bf16.msra.mxu0 0
        %252 = vmatprep.subr.bf16.mxu0 0
        %253 = vmatpush2.bf16.msra.mxu0 0
        %254 = vmatprep.subr.bf16.mxu0 0
        %255 = vmatpush2.bf16.msra.mxu0 0
        %256 = vmatprep.subr.bf16.mxu0 0
        %257 = vmatpush2.bf16.msra.mxu0 0
        %258 = vmatprep.mubr.bf16.mxu0 0
        %259 = vmatmul.mubr.bf16.gmra.mxu0 %v224
        %v260 = vpop.f32.mrf.mxu0
        %v261 = vadd.f32 0.0, %v260
        %v262 = vpop.f32.mrf.mxu0
        %v263 = vpop.f32.mrf.mxu0
        %v264 = vpop.f32.mrf.mxu0
        %265 = vdwg.mxu0
        %v266 = vpack.c.bf16 %v261, %v261
        %v267 = vld [vmem:[#allocation7] sm:$0xff]
        %269 = vrot.lane.b32.xlu0 %v266, 112
        %v270 = vpop.permute.xlu0 %269
        %vm271 = vcmask 130048
        %v273 = vsel %vm271, %v266, 0
        %v276 = vsel %vm271, %v270, 0
        %278 = vmatprep.subr.bf16.mxu0 0
        %279 = vmatpush1.bf16.xpose.msra.mxu0 0
        %280 = vmatprep.subr.bf16.mxu0 0
        %281 = vmatpush1.bf16.xpose.msra.mxu0 0
        %282 = vmatprep.subr.bf16.mxu0 0
        %283 = vmatpush1.bf16.xpose.msra.mxu0 0
        %284 = vmatprep.subr.bf16.mxu0 0
        %285 = vmatpush1.bf16.xpose.msra.mxu0 0
        %286 = vmatprep.subr.bf16.mxu0 0
        %287 = vmatpush1.bf16.xpose.msra.mxu0 0
        %288 = vmatprep.subr.bf16.mxu0 0
        %289 = vmatpush1.bf16.xpose.msra.mxu0 0
        %290 = vmatprep.subr.bf16.mxu0 0
        %291 = vmatpush1.bf16.xpose.msra.mxu0 0
        %292 = vmatprep.subr.bf16.mxu0 0
        %293 = vmatpush1.bf16.xpose.msra.mxu0 %v276
        %294 = vmatprep.subr.bf16.mxu0 0
        %295 = vmatpush2.bf16.xpose.msra.mxu0 0
        %296 = vmatprep.subr.bf16.mxu0 0
        %297 = vmatpush2.bf16.xpose.msra.mxu0 0
        %298 = vmatprep.subr.bf16.mxu0 0
        %299 = vmatpush2.bf16.xpose.msra.mxu0 0
        %300 = vmatprep.subr.bf16.mxu0 0
        %301 = vmatpush2.bf16.xpose.msra.mxu0 0
        %302 = vmatprep.subr.bf16.mxu0 0
        %303 = vmatpush2.bf16.xpose.msra.mxu0 0
        %304 = vmatprep.subr.bf16.mxu0 0
        %305 = vmatpush2.bf16.xpose.msra.mxu0 0
        %306 = vmatprep.subr.bf16.mxu0 0
        %307 = vmatpush2.bf16.xpose.msra.mxu0 0
        %308 = vmatprep.subr.bf16.mxu0 0
        %309 = vmatpush2.bf16.xpose.msra.mxu0 0
        %310 = vmatprep.mubr.bf16.mxu0 0
        %311 = vmatmul.mubr.bf16.gmra.mxu0 %v273
        %v312 = vpop.f32.mrf.mxu0
        %v313 = vadd.f32 %v267, %v312
        %v314 = vpop.f32.mrf.mxu0
        %v315 = vpop.f32.mrf.mxu0
        %v316 = vpop.f32.mrf.mxu0
        %317 = vdwg.mxu0
        %vm318 = vcmask 64512
        %v319 = vsel %vm318, %v313, -inf
        %320 = vmax.xlane.f32.xlu0 %v319
        %v321 = vpop.xlane.xlu0 %320
        %v322 = vsub.f32 %v313, %v321
        %v323 = vmul.f32 %v322, 1.442695
        %v324 = vpow.pop %v323
        %v325 = vsel %vm318, %v324, 0.0
        %326 = vadd.xlane.f32.xlu0 %v325
        %v327 = vpop.xlane.xlu0 %326
        %v328 = vrcp.pop %v327
        %v329 = vmul.f32 %v324, %v328
        %v330 = vpack.c.bf16 %v329, %v329
        %331 = vrot.lane.b32.xlu0 %v266, 96
        %v332 = vpop.permute.xlu0 %331
        %v334 = vsel %vm318, %v330, 0
        %vm336 = vcmask 1043456
        %v338 = vsel %vm336, %v332, 0
        %340 = vmatprep.subr.bf16.mxu0 0
        %341 = vmatpush1.bf16.msra.mxu0 0
        %342 = vmatprep.subr.bf16.mxu0 0
        %343 = vmatpush1.bf16.msra.mxu0 0
        %344 = vmatprep.subr.bf16.mxu0 0
        %345 = vmatpush1.bf16.msra.mxu0 0
        %346 = vmatprep.subr.bf16.mxu0 0
        %347 = vmatpush1.bf16.msra.mxu0 0
        %348 = vmatprep.subr.bf16.mxu0 0
        %349 = vmatpush1.bf16.msra.mxu0 0
        %350 = vmatprep.subr.bf16.mxu0 0
        %351 = vmatpush1.bf16.msra.mxu0 0
        %352 = vmatprep.subr.bf16.mxu0 0
        %353 = vmatpush1.bf16.msra.mxu0 0
        %354 = vmatprep.subr.bf16.mxu0 0
        %355 = vmatpush1.bf16.msra.mxu0 %v338
        %356 = vmatprep.subr.bf16.mxu0 0
        %357 = vmatpush2.bf16.msra.mxu0 0
        %358 = vmatprep.subr.bf16.mxu0 0
        %359 = vmatpush2.bf16.msra.mxu0 0
        %360 = vmatprep.subr.bf16.mxu0 0
        %361 = vmatpush2.bf16.msra.mxu0 0
        %362 = vmatprep.subr.bf16.mxu0 0
        %363 = vmatpush2.bf16.msra.mxu0 0
        %364 = vmatprep.subr.bf16.mxu0 0
        %365 = vmatpush2.bf16.msra.mxu0 0
        %366 = vmatprep.subr.bf16.mxu0 0
        %367 = vmatpush2.bf16.msra.mxu0 0
        %368 = vmatprep.subr.bf16.mxu0 0
        %369 = vmatpush2.bf16.msra.mxu0 0
        %370 = vmatprep.subr.bf16.mxu0 0
        %371 = vmatpush2.bf16.msra.mxu0 0
        %372 = vmatprep.mubr.bf16.mxu0 0
        %373 = vmatmul.mubr.bf16.gmra.mxu0 %v334
        %v374 = vpop.f32.mrf.mxu0
        %v375 = vadd.f32 0.0, %v374
        %v376 = vpop.f32.mrf.mxu0
        %v377 = vpop.f32.mrf.mxu0
        %v378 = vpop.f32.mrf.mxu0
        %379 = vdwg.mxu0
        %380 = vst.msk [vmem:[%s212] sm:$0xff] %vm271, %v375
        %s381 = sand.u32 %s97, 1
        %s382 = scalar_lea.sflag [#allocation4], %s381
        %s383 = sand.u32 %s97, 1
        %s384 = smul.addr %s383, 8
        %s385 = scalar_lea.vmem [#allocation8], %s384
        // Predicated region
        $region45: #{tpu_custom_call.1} parent=31 // pred_check
          %p386 = pneg %p107
        $region46: #{tpu_custom_call.1} parent=31 // pred_check_branch
          %388 = sbr.rel (%p386) target = $region48
        $region47: #{tpu_custom_call.1} parent=31 // pred_region
          %s390 = ssub.s32 128, 128
          %391 = vsyncadd %s382, %s390
          %s392 = smul.addr %s21, 128
          %s393 = scalar_lea.hbm %s3, %s392
          %s395 = sshll.u32 %s385, 4
          %s396 = int_to_ptr.vmem [resolvable:$true] %s395
          %398 = dma.vmem_to_hbm [thread:$0]  %s396, 128, %s393, %s382
        $region48: #{tpu_custom_call.1} parent=31 // pred_fallthru
          _
      $region32: #{tpu_custom_call.1} parent=5 // pred_fallthru
        _
      %p399 = scmp.le.s32.totalorder 2, %s16
      // Predicated region
      $region49: #{tpu_custom_call.1} parent=5 // pred_check
        %p400 = pneg %p399
      $region50: #{tpu_custom_call.1} parent=5 // pred_check_branch
        %402 = sbr.rel (%p400) target = $region52
      $region51: #{tpu_custom_call.1} parent=5 // pred_region
        %s403 = ssub.s32 %s16, 2
        // Predicated region
        $region53: #{tpu_custom_call.1} parent=51 // pred_check
          %p404 = pneg %p113
        $region54: #{tpu_custom_call.1} parent=51 // pred_check_branch
          %406 = sbr.rel (%p404) target = $region56
        $region55: #{tpu_custom_call.1} parent=51 // pred_region
          %s407 = sand.u32 %s98, 1
          %s408 = scalar_lea.sflag [#allocation4], %s407
          %s409 = sand.u32 %s98, 1
          %s410 = smul.addr %s409, 8
          %s411 = scalar_lea.vmem [#allocation8], %s410
          %412 = dma.done %s408, 128
        $region56: #{tpu_custom_call.1} parent=51 // pred_fallthru
          _
      $region52: #{tpu_custom_call.1} parent=5 // pred_fallthru
        _
    $region6: #{tpu_custom_call.1} parent=1 // loop_footer
      %s20 = sadd.s32 1, %s16
    $region7: #{tpu_custom_call.1} parent=1 // loop_footer_branch
      %15 = sbr.rel target = $region3
    $region8: #{tpu_custom_call.1} parent=1 // loop_exit
      _
    %413 = vsyncpa [#allocation3], 1
    %s414 = scalar_lea.sflag [#allocation3], 1
    %415 = vsyncpa %s414, 1
    %416 = vsyncpa [#allocation6], 1
    %417 = vsyncpa [#allocation4], 1
    %s418 = scalar_lea.sflag [#allocation4], 1
    %419 = vsyncpa %s418, 1

</llo_original>
